<compile_context>
chip_gen: v7x
topology: tpu7x:2x2x1
jax: 0.10.0
libtpu: 0.0.40
codegen_flags: <defaults>
</compile_context>

<pallas_src>
import math

import jax
import jax.numpy as jnp
from jax.experimental import pallas as pl
from jax.experimental.pallas import tpu as pltpu

IN_FEATURES = 72
HIDDEN = 48
OUT_FEATURES = 36


def _round_up(n, m):
    return ((n + m - 1) // m) * m


def _mlp_kernel(x_ref, w1_ref, b1_ref, w2_ref, b2_ref, o_ref):
    # x_ref: (TB, 72) tile of the flattened batch. pre_process is already
    # folded into w1/b1, so this is a pure 2-layer MLP on the MXU.
    x = x_ref[...]

    # fc1 + relu  (MXU matmul, f32 accumulate)
    h = jnp.dot(x, w1_ref[...], preferred_element_type=jnp.float32) + b1_ref[...]
    h = jnp.maximum(h, 0.0)

    # fc2 + relu
    o = jnp.dot(h, w2_ref[...], preferred_element_type=jnp.float32) + b2_ref[...]
    o_ref[...] = jnp.maximum(o, 0.0)


def fold_preprocess_into_fc1(w1, b1):
    """Fold the affine pre_process into fc1's parameters (do ONCE at init /
    parameter-load time, not per forward):

        relu(((x + c) * (1/3)) @ W1 + b1) == relu(x @ (W1/3) + b1')

    where c is 0 for columns < 36 (channel 0) and 1 for columns >= 36
    (channel 1), hence b1' = b1 + (1/3) * sum(W1[36:, :]).
    """
    w1_f = w1 * (1.0 / 3.0)
    b1_f = b1 + jnp.sum(w1[IN_FEATURES // 2:, :], axis=0, keepdims=True) * (1.0 / 3.0)
    return w1_f, b1_f


def neural_network_forward(x, w1_f, b1_f, w2, b2, *, block_rows=8192):
    """x: (B, 2, 36) float32 (contiguous) -> (B, 36) float32.

    `w1_f` / `b1_f` must be the pre-folded fc1 parameters from
    `fold_preprocess_into_fc1` (fold once, outside the per-call path).

    NOTE: the pre_process column split (cols 0..35 = channel 0, cols
    36..71 = channel 1) relies on x having layout (B, 2, 36); a transposed
    or non-contiguous input would silently break the semantics.
    """
    B = x.shape[0]
    assert x.shape[1:] == (2, IN_FEATURES // 2), "expected x of shape (B, 2, 36)"
    x2d = x.reshape(B, IN_FEATURES)  # glue: reshape only, no copy

    # Batch tiling:
    #   * tb multiple of 8 (sublane alignment),
    #   * capped at block_rows for VMEM friendliness,
    #   * capped at ceil(B/2) (rounded to 8) so the grid has >= 2 steps for
    #     any non-trivial B -> both v7x TensorCores get work under
    #     dimension_semantics=("parallel",).
    half = _round_up(max(1, pl.cdiv(B, 2)), 8)
    tb = max(8, min(block_rows, half))
    grid = (pl.cdiv(B, tb),)

    # No input padding / output slicing: Pallas masks the ragged last block
    # on writeback. Safe because rows are fully independent (no cross-row
    # reductions anywhere in this kernel).
    out = pl.pallas_call(
        _mlp_kernel,
        out_shape=jax.ShapeDtypeStruct((B, OUT_FEATURES), jnp.float32),
        grid=grid,
        in_specs=[
            # x: one batch tile per grid step -> double-buffered DMA pipeline.
            pl.BlockSpec((tb, IN_FEATURES), lambda i: (i, 0)),
            # Weights / biases: constant index_map -> resident in VMEM
            # across all grid steps (no re-DMA).
            pl.BlockSpec((IN_FEATURES, HIDDEN), lambda i: (0, 0)),
            pl.BlockSpec((1, HIDDEN), lambda i: (0, 0)),
            pl.BlockSpec((HIDDEN, OUT_FEATURES), lambda i: (0, 0)),
            pl.BlockSpec((1, OUT_FEATURES), lambda i: (0, 0)),
        ],
        out_specs=pl.BlockSpec((tb, OUT_FEATURES), lambda i: (i, 0)),
        compiler_params=pltpu.CompilerParams(
            # Batch tiles are independent -> shard across v7x's 2 TensorCores.
            dimension_semantics=("parallel",),
            # Keep the big-tile config compiling under v5e's 16 MiB scoped
            # default; 32 MiB is within budget on v5e/v6e/v7x alike.
            vmem_limit_bytes=32 * 1024 * 1024,
        ),
    )(x2d, w1_f, b1_f, w2, b2)

    return out


def init_params(key):
    """Deterministic init matching the shapes / init scheme of the module.

    kaiming_uniform_(a=0, mode='fan_in', nonlinearity='relu'):
        bound = sqrt(2) * sqrt(3 / fan_in)
    Linear bias default: uniform(-1/sqrt(fan_in), 1/sqrt(fan_in)).
    Weights are stored transposed: (in_features, out_features).
    """
    k1, k2, k3, k4 = jax.random.split(key, 4)

    bw1 = math.sqrt(2.0) * math.sqrt(3.0 / IN_FEATURES)
    w1 = jax.random.uniform(k1, (IN_FEATURES, HIDDEN), jnp.float32, -bw1, bw1)
    bb1 = 1.0 / math.sqrt(IN_FEATURES)
    b1 = jax.random.uniform(k2, (1, HIDDEN), jnp.float32, -bb1, bb1)

    bw2 = math.sqrt(2.0) * math.sqrt(3.0 / HIDDEN)
    w2 = jax.random.uniform(k3, (HIDDEN, OUT_FEATURES), jnp.float32, -bw2, bw2)
    bb2 = 1.0 / math.sqrt(HIDDEN)
    b2 = jax.random.uniform(k4, (1, OUT_FEATURES), jnp.float32, -bb2, bb2)

    return w1, b1, w2, b2


def _reference_forward(x, w1, b1, w2, b2):
    """Pure-JAX reference mirroring the PyTorch forward (unfolded params)."""
    x = x.at[:, 0].set(x[:, 0] / 3.0)
    x = x.at[:, 1].set((x[:, 1] + 1.0) / 3.0)
    x = x.reshape(-1, IN_FEATURES)
    h = jnp.maximum(x @ w1 + b1, 0.0)
    return jnp.maximum(h @ w2 + b2, 0.0)


if __name__ == "__main__":
    key = jax.random.PRNGKey(0)
    kx, kx2, kp = jax.random.split(key, 3)
    w1, b1, w2, b2 = init_params(kp)

    # Fold pre_process into fc1 ONCE (parameter-load time), not per forward.
    w1_f, b1_f = fold_preprocess_into_fc1(w1, b1)

    # Small shape consistent with the module: batch=2, channels=2, features=36.
    B = 2
    x = jax.random.normal(kx, (B, 2, IN_FEATURES // 2), jnp.float32)
    out = jax.block_until_ready(neural_network_forward(x, w1_f, b1_f, w2, b2))
    ref = _reference_forward(x, w1, b1, w2, b2)
    assert out.shape == (B, OUT_FEATURES)
    assert jnp.allclose(out, ref, atol=2e-5, rtol=2e-5)

    # Exercise multi-tile grid + ragged-last-block (boundary masking) path.
    B2 = 100
    x2 = jax.random.normal(kx2, (B2, 2, IN_FEATURES // 2), jnp.float32)
    out2 = jax.block_until_ready(
        neural_network_forward(x2, w1_f, b1_f, w2, b2, block_rows=32)
    )
    ref2 = _reference_forward(x2, w1, b1, w2, b2)
    assert out2.shape == (B2, OUT_FEATURES)
    assert jnp.allclose(out2, ref2, atol=2e-5, rtol=2e-5)

    print("KERNEL_OK")
</pallas_src>

<mosaic_0001>
module attributes {stable_mosaic.version = 11 : i64} {
  func.func @_mlp_kernel(%arg0: i32, %arg1: memref<8x72xf32, #tpu.memory_space<vmem>>, %arg2: memref<72x48xf32, #tpu.memory_space<vmem>>, %arg3: memref<1x48xf32, #tpu.memory_space<vmem>>, %arg4: memref<48x36xf32, #tpu.memory_space<vmem>>, %arg5: memref<1x36xf32, #tpu.memory_space<vmem>>, %arg6: memref<8x36xf32, #tpu.memory_space<vmem>>) attributes {dimension_semantics = [#tpu.dimension_semantics<parallel>], iteration_bounds = array<i64: 1>, scalar_prefetch = 0 : i64, scratch_operands = 0 : i64, tpu.core_type = #tpu.core_type<tc>, window_params = [{transform_indices = @transform_0, window_bounds = array<i64: 8, 72>}, {pipeline_mode = #tpu.pipeline_mode<synchronous>, transform_indices = @transform_1, window_bounds = array<i64: 72, 48>}, {pipeline_mode = #tpu.pipeline_mode<synchronous>, transform_indices = @transform_2, window_bounds = array<i64: 1, 48>}, {pipeline_mode = #tpu.pipeline_mode<synchronous>, transform_indices = @transform_3, window_bounds = array<i64: 48, 36>}, {pipeline_mode = #tpu.pipeline_mode<synchronous>, transform_indices = @transform_4, window_bounds = array<i64: 1, 36>}, {transform_indices = @transform_5, window_bounds = array<i64: 8, 36>}]} {
    %c0 = arith.constant 0 : index
    %c0_0 = arith.constant 0 : index
    %0 = vector.load %arg1[%c0, %c0_0] : memref<8x72xf32, #tpu.memory_space<vmem>>, vector<8x72xf32>
    %c0_1 = arith.constant 0 : index
    %c0_2 = arith.constant 0 : index
    %1 = vector.load %arg2[%c0_1, %c0_2] : memref<72x48xf32, #tpu.memory_space<vmem>>, vector<72x48xf32>
    %cst = arith.constant dense<0.000000e+00> : vector<8x48xf32>
    %2 = tpu.matmul %0, %1, %cst {dimension_numbers = #tpu.dot_dimension_numbers<[1], [0], [0], [1], [0, 0, 1, 1], [], []>} : vector<8x72xf32>, vector<72x48xf32>, vector<8x48xf32> -> vector<8x48xf32>
    %c0_3 = arith.constant 0 : index
    %c0_4 = arith.constant 0 : index
    %3 = vector.load %arg3[%c0_3, %c0_4] : memref<1x48xf32, #tpu.memory_space<vmem>>, vector<1x48xf32>
    %4 = vector.broadcast %3 : vector<1x48xf32> to vector<8x48xf32>
    %5 = arith.addf %2, %4 : vector<8x48xf32>
    %cst_5 = arith.constant 0.000000e+00 : f32
    %6 = vector.broadcast %cst_5 : f32 to vector<8x48xf32>
    %7 = arith.maximumf %5, %6 : vector<8x48xf32>
    %c0_6 = arith.constant 0 : index
    %c0_7 = arith.constant 0 : index
    %8 = vector.load %arg4[%c0_6, %c0_7] : memref<48x36xf32, #tpu.memory_space<vmem>>, vector<48x36xf32>
    %cst_8 = arith.constant dense<0.000000e+00> : vector<8x36xf32>
    %9 = tpu.matmul %7, %8, %cst_8 {dimension_numbers = #tpu.dot_dimension_numbers<[1], [0], [0], [1], [0, 0, 1, 1], [], []>} : vector<8x48xf32>, vector<48x36xf32>, vector<8x36xf32> -> vector<8x36xf32>
    %c0_9 = arith.constant 0 : index
    %c0_10 = arith.constant 0 : index
    %10 = vector.load %arg5[%c0_9, %c0_10] : memref<1x36xf32, #tpu.memory_space<vmem>>, vector<1x36xf32>
    %11 = vector.broadcast %10 : vector<1x36xf32> to vector<8x36xf32>
    %12 = arith.addf %9, %11 : vector<8x36xf32>
    %cst_11 = arith.constant 0.000000e+00 : f32
    %13 = vector.broadcast %cst_11 : f32 to vector<8x36xf32>
    %14 = arith.maximumf %12, %13 : vector<8x36xf32>
    %c0_12 = arith.constant 0 : index
    %c0_13 = arith.constant 0 : index
    %15 = vector.load %arg6[%c0_12, %c0_13] : memref<8x36xf32, #tpu.memory_space<vmem>>, vector<8x36xf32>
    tpu.vector_store %arg6[%c0_12, %c0_13], %14 {strides = array<i32>} : memref<8x36xf32, #tpu.memory_space<vmem>>, vector<8x36xf32>,
    return
  }
  func.func @transform_0(%arg0: i32) -> (i32, i32) {
    %c0_i32 = arith.constant 0 : i32
    %c0_i32_0 = arith.constant 0 : i32
    return %arg0, %c0_i32 : i32, i32
  }
  func.func @transform_1(%arg0: i32) -> (i32, i32) {
    %c0_i32 = arith.constant 0 : i32
    %c0_i32_0 = arith.constant 0 : i32
    %c0_i32_1 = arith.constant 0 : i32
    return %c0_i32, %c0_i32_0 : i32, i32
  }
  func.func @transform_2(%arg0: i32) -> (i32, i32) {
    %c0_i32 = arith.constant 0 : i32
    %c0_i32_0 = arith.constant 0 : i32
    %c0_i32_1 = arith.constant 0 : i32
    return %c0_i32, %c0_i32_0 : i32, i32
  }
  func.func @transform_3(%arg0: i32) -> (i32, i32) {
    %c0_i32 = arith.constant 0 : i32
    %c0_i32_0 = arith.constant 0 : i32
    %c0_i32_1 = arith.constant 0 : i32
    return %c0_i32, %c0_i32_0 : i32, i32
  }
  func.func @transform_4(%arg0: i32) -> (i32, i32) {
    %c0_i32 = arith.constant 0 : i32
    %c0_i32_0 = arith.constant 0 : i32
    %c0_i32_1 = arith.constant 0 : i32
    return %c0_i32, %c0_i32_0 : i32, i32
  }
  func.func @transform_5(%arg0: i32) -> (i32, i32) {
    %c0_i32 = arith.constant 0 : i32
    %c0_i32_0 = arith.constant 0 : i32
    return %arg0, %c0_i32 : i32, i32
  }
}

</mosaic_0001>

<llo_original>
// kernel: tpu_custom_call.1
$region0: #{tpu_custom_call.1}
  #allocation0 [shape = 'u32[]', space=smem, size = 0x4, offset = 0x4, fixed_abs, tag = 'smem constant byte address 0x4 - core index']
  #allocation1 [shape = 'u32[144,128]{1,0:T(1,128)}', space=vmem, size = 0x12000, scoped, tag = 'internal scratch']
  %s0 = inlined_call_operand.vmem [shape: f32[2,72], index: 0, kind: input, shape index: {}]
  %s1 = inlined_call_operand.vmem [shape: f32[72,48], index: 1, kind: input, shape index: {}]
  %s2 = inlined_call_operand.vmem [shape: f32[1,48], index: 2, kind: input, shape index: {}]
  %s3 = inlined_call_operand.vmem [shape: f32[48,36], index: 3, kind: input, shape index: {}]
  %s4 = inlined_call_operand.vmem [shape: f32[1,36], index: 4, kind: input, shape index: {}]
  %s5 = inlined_call_operand.hbm [shape: f32[2,36], index: 5, kind: output, shape index: {}]
  %s6 = sld [smem:[#allocation0]]
  $region30: #{tpu_custom_call.1} parent=0
    _
  %s8 = ssub.s32 1, %s6
  %s9 = scalar_select 0, %s8, %s6
  $region1: #{tpu_custom_call.1} parent=0
    #allocation2 [shape = 'u8[4096]{0}', space=vmem, size = 0x1000, scoped, tag = 'output window, operand 0, single buffered']
    #allocation3 [shape = 's32[1]{0}', space=sflag, size = 0x4, scoped, tag = 'scoped memory for tpu_custom_call.1']
    %10 = vsyncpa [#allocation3], 0
    // Predicated region
    $region2: #{tpu_custom_call.1} parent=1 // pred_check
      _
    $region3: #{tpu_custom_call.1} parent=1 // pred_check_branch
      %12 = sbr.rel (0) target = $region5
    $region4: #{tpu_custom_call.1} parent=1 // pred_region
      _
    $region5: #{tpu_custom_call.1} parent=1 // pred_fallthru
      _
    // Predicated region
    $region6: #{tpu_custom_call.1} parent=1 // pred_check
      _
    $region7: #{tpu_custom_call.1} parent=1 // pred_check_branch
      %14 = sbr.rel (0) target = $region9
    $region8: #{tpu_custom_call.1} parent=1 // pred_region
      _
    $region9: #{tpu_custom_call.1} parent=1 // pred_fallthru
      _
    // Predicated region
    $region10: #{tpu_custom_call.1} parent=1 // pred_check
      _
    $region11: #{tpu_custom_call.1} parent=1 // pred_check_branch
      %16 = sbr.rel (0) target = $region13
    $region12: #{tpu_custom_call.1} parent=1 // pred_region
      _
    $region13: #{tpu_custom_call.1} parent=1 // pred_fallthru
      _
    // Predicated region
    $region14: #{tpu_custom_call.1} parent=1 // pred_check
      _
    $region15: #{tpu_custom_call.1} parent=1 // pred_check_branch
      %18 = sbr.rel (0) target = $region17
    $region16: #{tpu_custom_call.1} parent=1 // pred_region
      _
    $region17: #{tpu_custom_call.1} parent=1 // pred_fallthru
      _
    // Predicated region
    $region18: #{tpu_custom_call.1} parent=1 // pred_check
      _
    $region19: #{tpu_custom_call.1} parent=1 // pred_check_branch
      %20 = sbr.rel (0) target = $region21
    $region20: #{tpu_custom_call.1} parent=1 // pred_region
      _
    $region21: #{tpu_custom_call.1} parent=1 // pred_fallthru
      _
    %v21 = vld [vmem:[%s0] sm:$0xff]
    %v22 = vld [vmem:[%s1] sm:$0xff]
    %v23 = vld [vmem:[%s1 + $0x8] sm:$0xff]
    %v24 = vld [vmem:[%s1 + $0x10] sm:$0xff]
    %v25 = vld [vmem:[%s1 + $0x18] sm:$0xff]
    %v26 = vld [vmem:[%s1 + $0x20] sm:$0xff]
    %v27 = vld [vmem:[%s1 + $0x28] sm:$0xff]
    %v28 = vld [vmem:[%s1 + $0x30] sm:$0xff]
    %v29 = vld [vmem:[%s1 + $0x38] sm:$0xff]
    %v30 = vld [vmem:[%s1 + $0x40] sm:$0xff]
    %v31 = vld [vmem:[%s2] sm:$0x1]
    %v33 = vlaneseq
    %v34 = vshrl.u32 %v33, 7
    %v35 = vsub.s32 0, %v34
    %v36 = vrot.slane %v31, %v35
    %vm38 = vcmask 588800
    %v40 = vsel %vm38, %v21, 0
    %42 = vmatprep.subr.mxu0 0.0
    %43 = vmatpush1.msra.mxu0 %v22
    %44 = vmatprep.subr.mxu0 0.0
    %45 = vmatpush1.msra.mxu0 %v23
    %46 = vmatprep.subr.mxu0 0.0
    %47 = vmatpush1.msra.mxu0 %v24
    %48 = vmatprep.subr.mxu0 0.0
    %49 = vmatpush1.msra.mxu0 %v25
    %50 = vmatprep.subr.mxu0 0.0
    %51 = vmatpush1.msra.mxu0 %v26
    %52 = vmatprep.subr.mxu0 0.0
    %53 = vmatpush1.msra.mxu0 %v27
    %54 = vmatprep.subr.mxu0 0.0
    %55 = vmatpush1.msra.mxu0 %v28
    %56 = vmatprep.subr.mxu0 0.0
    %57 = vmatpush1.msra.mxu0 %v29
    %58 = vmatprep.subr.mxu0 0.0
    %59 = vmatpush1.msra.mxu0 %v30
    %60 = vmatprep.subr.mxu0 0.0
    %61 = vmatpush1.msra.mxu0 0.0
    %62 = vmatprep.subr.mxu0 0.0
    %63 = vmatpush1.msra.mxu0 0.0
    %64 = vmatprep.subr.mxu0 0.0
    %65 = vmatpush1.msra.mxu0 0.0
    %66 = vmatprep.subr.mxu0 0.0
    %67 = vmatpush1.msra.mxu0 0.0
    %68 = vmatprep.subr.mxu0 0.0
    %69 = vmatpush1.msra.mxu0 0.0
    %70 = vmatprep.subr.mxu0 0.0
    %71 = vmatpush1.msra.mxu0 0.0
    %72 = vmatprep.subr.mxu0 0.0
    %73 = vmatpush1.msra.mxu0 0.0
    %74 = vmatprep.subr.mxu0 0.0
    %75 = vmatpush1.msra.mxu0 0.0
    %76 = vmatprep.subr.mxu0 0.0
    %77 = vmatpush1.msra.mxu0 0.0
    %78 = vmatprep.subr.mxu0 0.0
    %79 = vmatpush1.msra.mxu0 0.0
    %80 = vmatprep.subr.mxu0 0.0
    %81 = vmatpush1.msra.mxu0 0.0
    %82 = vmatprep.subr.mxu0 0.0
    %83 = vmatpush1.msra.mxu0 0.0
    %84 = vmatprep.subr.mxu0 0.0
    %85 = vmatpush1.msra.mxu0 0.0
    %86 = vmatprep.subr.mxu0 0.0
    %87 = vmatpush1.msra.mxu0 0.0
    %88 = vmatprep.subr.mxu0 0.0
    %89 = vmatpush1.msra.mxu0 0.0
    %90 = vmatprep.subr.mxu0 0.0
    %91 = vmatpush1.msra.mxu0 0.0
    %92 = vmatprep.subr.mxu0 0.0
    %93 = vmatpush1.msra.mxu0 0.0
    %94 = vmatprep.subr.mxu0 0.0
    %95 = vmatpush1.msra.mxu0 0.0
    %96 = vmatprep.subr.mxu0 0.0
    %97 = vmatpush1.msra.mxu0 0.0
    %98 = vmatprep.subr.mxu0 0.0
    %99 = vmatpush1.msra.mxu0 0.0
    %100 = vmatprep.subr.mxu0 0.0
    %101 = vmatpush1.msra.mxu0 0.0
    %102 = vmatprep.subr.mxu0 0.0
    %103 = vmatpush1.msra.mxu0 0.0
    %104 = vmatprep.subr.mxu0 0.0
    %105 = vmatpush1.msra.mxu0 0.0
    %106 = vmatprep.mubr.f32.mxu0 0.0
    %107 = vmatmul.mubr.f32.gmra.mrb[0].mxu0 %v40
    %v108 = vpop.f32.mrb[0].mxu0
    %v109 = vadd.f32 %v36, %v108
    %v110 = vpop.f32.mrb[0].mxu0
    %111 = vdwg.mxu0
    %v112 = vmax.f32 %v109, 0.0
    %v113 = vld [vmem:[%s3] sm:$0xff]
    %v114 = vld [vmem:[%s3 + $0x8] sm:$0xff]
    %v115 = vld [vmem:[%s3 + $0x10] sm:$0xff]
    %v116 = vld [vmem:[%s3 + $0x18] sm:$0xff]
    %v117 = vld [vmem:[%s3 + $0x20] sm:$0xff]
    %v118 = vld [vmem:[%s3 + $0x28] sm:$0xff]
    %v119 = vld [vmem:[%s4] sm:$0x1]
    %v121 = vlaneseq
    %v122 = vshrl.u32 %v121, 7
    %v123 = vsub.s32 0, %v122
    %v124 = vrot.slane %v119, %v123
    %vm126 = vcmask 392192
    %v128 = vsel %vm126, %v112, 0
    %130 = vmatprep.subr.mxu0 0.0
    %131 = vmatpush1.msra.mxu0 %v113
    %132 = vmatprep.subr.mxu0 0.0
    %133 = vmatpush1.msra.mxu0 %v114
    %134 = vmatprep.subr.mxu0 0.0
    %135 = vmatpush1.msra.mxu0 %v115
    %136 = vmatprep.subr.mxu0 0.0
    %137 = vmatpush1.msra.mxu0 %v116
    %138 = vmatprep.subr.mxu0 0.0
    %139 = vmatpush1.msra.mxu0 %v117
    %140 = vmatprep.subr.mxu0 0.0
    %141 = vmatpush1.msra.mxu0 %v118
    %142 = vmatprep.subr.mxu0 0.0
    %143 = vmatpush1.msra.mxu0 0.0
    %144 = vmatprep.subr.mxu0 0.0
    %145 = vmatpush1.msra.mxu0 0.0
    %146 = vmatprep.subr.mxu0 0.0
    %147 = vmatpush1.msra.mxu0 0.0
    %148 = vmatprep.subr.mxu0 0.0
    %149 = vmatpush1.msra.mxu0 0.0
    %150 = vmatprep.subr.mxu0 0.0
    %151 = vmatpush1.msra.mxu0 0.0
    %152 = vmatprep.subr.mxu0 0.0
    %153 = vmatpush1.msra.mxu0 0.0
    %154 = vmatprep.subr.mxu0 0.0
    %155 = vmatpush1.msra.mxu0 0.0
    %156 = vmatprep.subr.mxu0 0.0
    %157 = vmatpush1.msra.mxu0 0.0
    %158 = vmatprep.subr.mxu0 0.0
    %159 = vmatpush1.msra.mxu0 0.0
    %160 = vmatprep.subr.mxu0 0.0
    %161 = vmatpush1.msra.mxu0 0.0
    %162 = vmatprep.subr.mxu0 0.0
    %163 = vmatpush1.msra.mxu0 0.0
    %164 = vmatprep.subr.mxu0 0.0
    %165 = vmatpush1.msra.mxu0 0.0
    %166 = vmatprep.subr.mxu0 0.0
    %167 = vmatpush1.msra.mxu0 0.0
    %168 = vmatprep.subr.mxu0 0.0
    %169 = vmatpush1.msra.mxu0 0.0
    %170 = vmatprep.subr.mxu0 0.0
    %171 = vmatpush1.msra.mxu0 0.0
    %172 = vmatprep.subr.mxu0 0.0
    %173 = vmatpush1.msra.mxu0 0.0
    %174 = vmatprep.subr.mxu0 0.0
    %175 = vmatpush1.msra.mxu0 0.0
    %176 = vmatprep.subr.mxu0 0.0
    %177 = vmatpush1.msra.mxu0 0.0
    %178 = vmatprep.subr.mxu0 0.0
    %179 = vmatpush1.msra.mxu0 0.0
    %180 = vmatprep.subr.mxu0 0.0
    %181 = vmatpush1.msra.mxu0 0.0
    %182 = vmatprep.subr.mxu0 0.0
    %183 = vmatpush1.msra.mxu0 0.0
    %184 = vmatprep.subr.mxu0 0.0
    %185 = vmatpush1.msra.mxu0 0.0
    %186 = vmatprep.subr.mxu0 0.0
    %187 = vmatpush1.msra.mxu0 0.0
    %188 = vmatprep.subr.mxu0 0.0
    %189 = vmatpush1.msra.mxu0 0.0
    %190 = vmatprep.subr.mxu0 0.0
    %191 = vmatpush1.msra.mxu0 0.0
    %192 = vmatprep.subr.mxu0 0.0
    %193 = vmatpush1.msra.mxu0 0.0
    %194 = vmatprep.mubr.f32.mxu0 0.0
    %195 = vmatmul.mubr.f32.gmra.mrb[0].mxu0 %v128
    %v196 = vpop.f32.mrb[0].mxu0
    %v197 = vadd.f32 %v124, %v196
    %v198 = vpop.f32.mrb[0].mxu0
    %199 = vdwg.mxu0
    %v200 = vmax.f32 %v197, 0.0
    %vm201 = vcmask 293888
    %202 = vst.msk [vmem:[#allocation2] sm:$0xff] %vm201, %v200
    // Predicated region
    $region22: #{tpu_custom_call.1} parent=1 // pred_check
      _
    $region23: #{tpu_custom_call.1} parent=1 // pred_check_branch
      %204 = sbr.rel (0) target = $region25
    $region24: #{tpu_custom_call.1} parent=1 // pred_region
      %s206 = ssub.s32 128, 32
      %207 = vsyncadd [#allocation3], %s206
      %s208 = sshll.u32 [#allocation2], 4
      %s209 = int_to_ptr.vmem [resolvable:$true] %s208
      %214 = dma.vmem_to_hbm [thread:$0]  %s209, 32, %s5, [#allocation3], 32, 32, 2
    $region25: #{tpu_custom_call.1} parent=1 // pred_fallthru
      _
    // Predicated region
    $region26: #{tpu_custom_call.1} parent=1 // pred_check
      _
    $region27: #{tpu_custom_call.1} parent=1 // pred_check_branch
      %216 = sbr.rel (0) target = $region29
    $region28: #{tpu_custom_call.1} parent=1 // pred_region
      %217 = dma.done [#allocation3], 128
    $region29: #{tpu_custom_call.1} parent=1 // pred_fallthru
      _
    %218 = vsyncpa [#allocation3], 1

</llo_original>
